<compile_context>
chip_gen: v7x
topology: tpu7x:2x2x1
jax: 0.10.0
libtpu: 0.0.40
codegen_flags: <defaults>
</compile_context>

<pallas_src>
import functools

import jax
import jax.numpy as jnp
from jax.experimental import pallas as pl
from jax.experimental.pallas import tpu as pltpu


def mul_lea_kernel(q_ref, x_ref, x0_ref, wg_ref, wmask_ref, out_ref, acc_ref, *, tj):
    j = pl.program_id(1)
    nj = pl.num_programs(1)

    @pl.when(j == 0)
    def _init():
        acc_ref[...] = jnp.zeros_like(acc_ref)

    # ---- scores for this key block: s[i, jj] = <q[i, :], x[:, jj]> -------------
    q = q_ref[0]                                          # (N, c)  bf16, resident
    xb = x_ref[0].astype(jnp.bfloat16)                    # (c, TJ)
    s = jnp.dot(q, xb, preferred_element_type=jnp.float32)        # (N, TJ) f32

    # ---- softmax over the *query* axis (torch Softmax(dim=1)) ------------------
    # Axis 0 is the full normalization axis, so it is exact within this key block.
    m = jnp.max(s, axis=0, keepdims=True)                 # (1, TJ)
    e = jnp.exp(s - m)                                    # (N, TJ) f32
    denom = jnp.sum(e, axis=0, keepdims=True)             # (1, TJ)
    inv = pl.reciprocal(denom, approx=True)               # (1, TJ)  EUP, ~free

    # ---- g projection for this key block, from the resident full x0 tile -------
    col = pl.multiple_of(j * tj, tj)                      # tile-aligned lane start
    x0_blk = x0_ref[0, :, pl.ds(col, tj)]                 # (2c, TJ) f32 VMEM slice
    g = jnp.dot(wg_ref[...], x0_blk,
                preferred_element_type=jnp.float32)       # (c, TJ) f32
    g = (g * inv).astype(jnp.bfloat16)                    # 1/denom folded into g

    # ---- accumulate y^T: acc[k, i] += sum_jj g_scaled[k, jj] * e[i, jj] ---------
    acc_ref[...] += jax.lax.dot_general(
        g, e.astype(jnp.bfloat16),
        (((1,), (1,)), ((), ())),                         # contract the TJ axis
        preferred_element_type=jnp.float32)               # (c, N) f32

    # ---- finalize: conv_mask + residual, lane-dense full-N store ---------------
    @pl.when(j == nj - 1)
    def _finalize():
        mask = jnp.dot(wmask_ref[...], acc_ref[...],
                       preferred_element_type=jnp.float32)        # (2c, N)
        out_ref[0] = (mask + x0_ref[0]).astype(out_ref.dtype)


def _pick_key_block(n, target):
    """Largest multiple of 128 that divides n and is <= target; else full n."""
    tj = min(target, n)
    tj -= tj % 128
    while tj >= 128:
        if n % tj == 0:
            return tj
        tj -= 128
    return n


def _vmem_limit_bytes(n, c, c2, tj):
    def pad(v, m):
        return -(-v // m) * m
    q_b   = pad(n, 16) * pad(c, 128) * 2            # resident bf16 query
    x_b   = pad(c, 8) * pad(tj, 128) * 4            # key block
    x0_b  = pad(c2, 8) * pad(n, 128) * 4            # resident full x0 (g + residual)
    w_b   = pad(c, 8) * pad(c2, 128) * 4 + pad(c2, 8) * pad(c, 128) * 4
    out_b = pad(c2, 8) * pad(n, 128) * 4
    acc_b = pad(c, 8) * pad(n, 128) * 4
    tmp_b = 3 * pad(n, 8) * pad(tj, 128) * 4        # score / exp temporaries
    est = 2 * (q_b + x_b + x0_b + w_b + out_b) + acc_b + tmp_b
    # ~2x headroom; never below the per-gen defaults, never above v7x's 64 MiB.
    return int(min(max(2 * est, 32 * 1024 * 1024), 64 * 1024 * 1024))


def mul_lea_block(x0, x, x_dsm, w_phi, w_theta, w_g, w_mask, *, key_block=512):
    """x0: (B, 2C, H, W); x, x_dsm: (B, C, H, W)  -- NCHW like PyTorch."""
    b, c2, h, w = x0.shape
    c = x.shape[1]
    n = h * w
    assert c2 == 2 * c
    tj = _pick_key_block(n, key_block)
    nj = n // tj

    # NCHW -> (B, C, N): pure reshape, no transpose / extra HBM round trips.
    x0_cn = x0.reshape(b, c2, n)
    x_cn = x.reshape(b, c, n)
    xd_cn = x_dsm.reshape(b, c, n)

    # Fold conv_theta / conv_phi:  S = theta^T phi = xd^T (w_theta^T w_phi) x.
    # The small (B, N, c) query tensor is the only layout shuffle done in XLA.
    m_qk = w_theta.T @ w_phi                                           # (c, c)
    q = jnp.einsum('bln,lk->bnk', xd_cn, m_qk).astype(jnp.bfloat16)    # (B, N, c)

    kernel = functools.partial(mul_lea_kernel, tj=tj)

    out_cn = pl.pallas_call(
        kernel,
        out_shape=jax.ShapeDtypeStruct((b, c2, n), x0.dtype),
        grid_spec=pltpu.PrefetchScalarGridSpec(
            num_scalar_prefetch=0,
            grid=(b, nj),
            in_specs=[
                pl.BlockSpec((1, n, c), lambda i, j: (i, 0, 0)),    # q (resident)
                pl.BlockSpec((1, c, tj), lambda i, j: (i, 0, j)),   # x   key block
                pl.BlockSpec((1, c2, n), lambda i, j: (i, 0, 0)),   # x0  full (g + residual)
                pl.BlockSpec((c, c2), lambda i, j: (0, 0)),         # w_g
                pl.BlockSpec((c2, c), lambda i, j: (0, 0)),         # w_mask
            ],
            out_specs=pl.BlockSpec((1, c2, n), lambda i, j: (i, 0, 0)),
            scratch_shapes=[pltpu.VMEM((c, n), jnp.float32)],       # y^T accumulator
        ),
        compiler_params=pltpu.CompilerParams(
            dimension_semantics=("parallel", "arbitrary"),
            vmem_limit_bytes=_vmem_limit_bytes(n, c, c2, tj)),
    )(q, x_cn, x0_cn, w_g, w_mask)

    return out_cn.reshape(b, c2, h, w)


def reference_jax(x0, x, x_dsm, w_phi, w_theta, w_g, w_mask):
    """Plain-JAX mirror of the PyTorch forward, for correctness checking."""
    b, c2, h, w = x0.shape
    c = x.shape[1]
    n = h * w
    x_phi = jnp.einsum('oc,bchw->bohw', w_phi, x).reshape(b, c // 2, n)
    x_theta = jnp.einsum('oc,bchw->bohw', w_theta, x_dsm).reshape(b, c // 2, n)
    x_theta = jnp.transpose(x_theta, (0, 2, 1))
    x_g = jnp.einsum('oc,bchw->bohw', w_g, x0).reshape(b, c, n)
    x_g = jnp.transpose(x_g, (0, 2, 1))
    s = jnp.matmul(x_theta, x_phi)                      # (b, N, N)
    a = jax.nn.softmax(s, axis=1)                       # torch Softmax(dim=1)
    y = jnp.matmul(a, x_g)                              # (b, N, c)
    y = jnp.transpose(y, (0, 2, 1)).reshape(b, c, h, w)
    mask = jnp.einsum('oc,bchw->bohw', w_mask, y)
    return mask + x0


if __name__ == "__main__":
    B, C, H, W = 2, 4, 16, 16          # channel = 4 -> inter_channel = 2
    IC = C // 2

    key = jax.random.PRNGKey(0)
    k = jax.random.split(key, 7)
    x0 = jax.random.normal(k[0], (B, 2 * C, H, W), dtype=jnp.float32)
    x = jax.random.normal(k[1], (B, C, H, W), dtype=jnp.float32)
    x_dsm = jax.random.normal(k[2], (B, C, H, W), dtype=jnp.float32)

    # Deterministic "conv" weights (1x1 kernels, no bias), shape (Cout, Cin).
    w_phi = 0.1 * jax.random.normal(k[3], (IC, C), dtype=jnp.float32)
    w_theta = 0.1 * jax.random.normal(k[4], (IC, C), dtype=jnp.float32)
    w_g = 0.1 * jax.random.normal(k[5], (IC * 2, C * 2), dtype=jnp.float32)
    w_mask = 0.1 * jax.random.normal(k[6], (C * 2, IC * 2), dtype=jnp.float32)

    # key_block=128 -> N=256 splits into 2 key blocks, exercising the accumulator.
    out = mul_lea_block(x0, x, x_dsm, w_phi, w_theta, w_g, w_mask, key_block=128)
    out = jax.block_until_ready(out)

    ref = reference_jax(x0, x, x_dsm, w_phi, w_theta, w_g, w_mask)
    assert out.shape == (B, 2 * C, H, W)
    # bf16 MXU operands + approx reciprocal: tolerance loosened from 1e-3 to 1e-2.
    assert jnp.allclose(out, ref, rtol=1e-2, atol=1e-2), "mismatch vs JAX reference"

    print("KERNEL_OK")
</pallas_src>

<mosaic_0001>
module attributes {stable_mosaic.version = 11 : i64} {
  func.func @mul_lea_kernel(%arg0: i32, %arg1: i32, %arg2: memref<1x256x4xbf16, #tpu.memory_space<vmem>>, %arg3: memref<1x4x128xf32, #tpu.memory_space<vmem>>, %arg4: memref<1x8x256xf32, #tpu.memory_space<vmem>>, %arg5: memref<4x8xf32, #tpu.memory_space<vmem>>, %arg6: memref<8x4xf32, #tpu.memory_space<vmem>>, %arg7: memref<1x8x256xf32, #tpu.memory_space<vmem>>, %arg8: memref<4x256xf32, #tpu.memory_space<vmem>>) attributes {dimension_semantics = [#tpu.dimension_semantics<parallel>, #tpu.dimension_semantics<arbitrary>], iteration_bounds = array<i64: 2, 2>, scalar_prefetch = 0 : i64, scratch_operands = 1 : i64, tpu.core_type = #tpu.core_type<tc>, window_params = [{transform_indices = @transform_0, window_bounds = array<i64: 1, 256, 4>}, {transform_indices = @transform_1, window_bounds = array<i64: 1, 4, 128>}, {transform_indices = @transform_2, window_bounds = array<i64: 1, 8, 256>}, {pipeline_mode = #tpu.pipeline_mode<synchronous>, transform_indices = @transform_3, window_bounds = array<i64: 4, 8>}, {pipeline_mode = #tpu.pipeline_mode<synchronous>, transform_indices = @transform_4, window_bounds = array<i64: 8, 4>}, {transform_indices = @transform_5, window_bounds = array<i64: 1, 8, 256>}]} {
    %c0_i32 = arith.constant 0 : i32
    %0 = arith.cmpi eq, %arg1, %c0_i32 : i32
    %1 = arith.extui %0 : i1 to i32
    %c0_i32_0 = arith.constant 0 : i32
    %2 = arith.cmpi ne, %1, %c0_i32_0 : i32
    scf.if %2 {
      %cst_19 = arith.constant 0.000000e+00 : f32
      %35 = vector.broadcast %cst_19 : f32 to vector<4x256xf32>
      %c0_20 = arith.constant 0 : index
      %c0_21 = arith.constant 0 : index
      %36 = vector.load %arg8[%c0_20, %c0_21] : memref<4x256xf32, #tpu.memory_space<vmem>>, vector<4x256xf32>
      tpu.vector_store %arg8[%c0_20, %c0_21], %35 {strides = array<i32>} : memref<4x256xf32, #tpu.memory_space<vmem>>, vector<4x256xf32>,
    } else {
    }
    %c0 = arith.constant 0 : index
    %c0_1 = arith.constant 0 : index
    %c0_2 = arith.constant 0 : index
    %3 = vector.load %arg2[%c0, %c0_1, %c0_2] : memref<1x256x4xbf16, #tpu.memory_space<vmem>>, vector<1x256x4xbf16>
    %4 = vector.shape_cast %3 : vector<1x256x4xbf16> to vector<256x4xbf16>
    %c0_3 = arith.constant 0 : index
    %c0_4 = arith.constant 0 : index
    %c0_5 = arith.constant 0 : index
    %5 = vector.load %arg3[%c0_3, %c0_4, %c0_5] : memref<1x4x128xf32, #tpu.memory_space<vmem>>, vector<1x4x128xf32>
    %6 = vector.shape_cast %5 : vector<1x4x128xf32> to vector<4x128xf32>
    %7 = arith.truncf %6 : vector<4x128xf32> to vector<4x128xbf16>
    %cst = arith.constant dense<0.000000e+00> : vector<256x128xf32>
    %8 = tpu.matmul %4, %7, %cst {dimension_numbers = #tpu.dot_dimension_numbers<[1], [0], [0], [1], [0, 0, 1, 1], [], []>} : vector<256x4xbf16>, vector<4x128xbf16>, vector<256x128xf32> -> vector<256x128xf32>
    %cst_6 = arith.constant dense<0xFF800000> : vector<128xf32>
    %9 = vector.multi_reduction <maximumf>, %8, %cst_6 [0] : vector<256x128xf32> to vector<128xf32>
    %10 = vector.shape_cast %9 : vector<128xf32> to vector<1x128xf32>
    %11 = vector.broadcast %10 : vector<1x128xf32> to vector<256x128xf32>
    %12 = arith.subf %8, %11 : vector<256x128xf32>
    %13 = math.exp %12 : vector<256x128xf32>
    %cst_7 = arith.constant dense<0.000000e+00> : vector<128xf32>
    %14 = vector.multi_reduction <add>, %13, %cst_7 [0] : vector<256x128xf32> to vector<128xf32>
    %15 = vector.shape_cast %14 : vector<128xf32> to vector<1x128xf32>
    %16 = tpu.reciprocal %15 {approx = true} : vector<1x128xf32> -> vector<1x128xf32>
    %c128_i32 = arith.constant 128 : i32
    %17 = arith.muli %arg1, %c128_i32 : i32
    %18 = tpu.assume_multiple %17, 128 : i32
    %c0_8 = arith.constant 0 : index
    %c0_9 = arith.constant 0 : index
    %19 = arith.index_cast %18 : i32 to index
    %20 = vector.load %arg4[%c0_8, %c0_9, %19] : memref<1x8x256xf32, #tpu.memory_space<vmem>>, vector<1x8x128xf32>
    %21 = vector.shape_cast %20 : vector<1x8x128xf32> to vector<8x128xf32>
    %c0_10 = arith.constant 0 : index
    %c0_11 = arith.constant 0 : index
    %22 = vector.load %arg5[%c0_10, %c0_11] : memref<4x8xf32, #tpu.memory_space<vmem>>, vector<4x8xf32>
    %cst_12 = arith.constant dense<0.000000e+00> : vector<4x128xf32>
    %23 = tpu.matmul %22, %21, %cst_12 {dimension_numbers = #tpu.dot_dimension_numbers<[1], [0], [0], [1], [0, 0, 1, 1], [], []>} : vector<4x8xf32>, vector<8x128xf32>, vector<4x128xf32> -> vector<4x128xf32>
    %24 = vector.broadcast %16 : vector<1x128xf32> to vector<4x128xf32>
    %25 = arith.mulf %23, %24 : vector<4x128xf32>
    %26 = arith.truncf %25 : vector<4x128xf32> to vector<4x128xbf16>
    %c0_13 = arith.constant 0 : index
    %c0_14 = arith.constant 0 : index
    %27 = vector.load %arg8[%c0_13, %c0_14] : memref<4x256xf32, #tpu.memory_space<vmem>>, vector<4x256xf32>
    %28 = arith.truncf %13 : vector<256x128xf32> to vector<256x128xbf16>
    %cst_15 = arith.constant dense<0.000000e+00> : vector<4x256xf32>
    %29 = tpu.matmul %26, %28, %cst_15 {dimension_numbers = #tpu.dot_dimension_numbers<[1], [1], [0], [0], [0, 0, 1, 0], [], []>} : vector<4x128xbf16>, vector<256x128xbf16>, vector<4x256xf32> -> vector<4x256xf32>
    %30 = arith.addf %27, %29 : vector<4x256xf32>
    %c0_16 = arith.constant 0 : index
    %c0_17 = arith.constant 0 : index
    %31 = vector.load %arg8[%c0_16, %c0_17] : memref<4x256xf32, #tpu.memory_space<vmem>>, vector<4x256xf32>
    tpu.vector_store %arg8[%c0_16, %c0_17], %30 {strides = array<i32>} : memref<4x256xf32, #tpu.memory_space<vmem>>, vector<4x256xf32>,
    %c1_i32 = arith.constant 1 : i32
    %32 = arith.cmpi eq, %arg1, %c1_i32 : i32
    %33 = arith.extui %32 : i1 to i32
    %c0_i32_18 = arith.constant 0 : i32
    %34 = arith.cmpi ne, %33, %c0_i32_18 : i32
    scf.if %34 {
      %c0_19 = arith.constant 0 : index
      %c0_20 = arith.constant 0 : index
      %35 = vector.load %arg6[%c0_19, %c0_20] : memref<8x4xf32, #tpu.memory_space<vmem>>, vector<8x4xf32>
      %c0_21 = arith.constant 0 : index
      %c0_22 = arith.constant 0 : index
      %36 = vector.load %arg8[%c0_21, %c0_22] : memref<4x256xf32, #tpu.memory_space<vmem>>, vector<4x256xf32>
      %cst_23 = arith.constant dense<0.000000e+00> : vector<8x256xf32>
      %37 = tpu.matmul %35, %36, %cst_23 {dimension_numbers = #tpu.dot_dimension_numbers<[1], [0], [0], [1], [0, 0, 1, 1], [], []>} : vector<8x4xf32>, vector<4x256xf32>, vector<8x256xf32> -> vector<8x256xf32>
      %c0_24 = arith.constant 0 : index
      %c0_25 = arith.constant 0 : index
      %c0_26 = arith.constant 0 : index
      %38 = vector.load %arg4[%c0_24, %c0_25, %c0_26] : memref<1x8x256xf32, #tpu.memory_space<vmem>>, vector<1x8x256xf32>
      %39 = vector.shape_cast %38 : vector<1x8x256xf32> to vector<8x256xf32>
      %40 = arith.addf %37, %39 : vector<8x256xf32>
      %c0_27 = arith.constant 0 : index
      %c0_28 = arith.constant 0 : index
      %c0_29 = arith.constant 0 : index
      %41 = vector.load %arg7[%c0_27, %c0_28, %c0_29] : memref<1x8x256xf32, #tpu.memory_space<vmem>>, vector<1x8x256xf32>
      %42 = vector.shape_cast %41 : vector<1x8x256xf32> to vector<8x256xf32>
      %43 = vector.shape_cast %40 : vector<8x256xf32> to vector<1x8x256xf32>
      tpu.vector_store %arg7[%c0_27, %c0_28, %c0_29], %43 {strides = array<i32>} : memref<1x8x256xf32, #tpu.memory_space<vmem>>, vector<1x8x256xf32>,
    } else {
    }
    return
  }
  func.func @transform_0(%arg0: i32, %arg1: i32) -> (i32, i32, i32) {
    %c0_i32 = arith.constant 0 : i32
    %c0_i32_0 = arith.constant 0 : i32
    %c0_i32_1 = arith.constant 0 : i32
    return %arg0, %c0_i32, %c0_i32_0 : i32, i32, i32
  }
  func.func @transform_1(%arg0: i32, %arg1: i32) -> (i32, i32, i32) {
    %c0_i32 = arith.constant 0 : i32
    %c0_i32_0 = arith.constant 0 : i32
    return %arg0, %c0_i32, %arg1 : i32, i32, i32
  }
  func.func @transform_2(%arg0: i32, %arg1: i32) -> (i32, i32, i32) {
    %c0_i32 = arith.constant 0 : i32
    %c0_i32_0 = arith.constant 0 : i32
    %c0_i32_1 = arith.constant 0 : i32
    return %arg0, %c0_i32, %c0_i32_0 : i32, i32, i32
  }
  func.func @transform_3(%arg0: i32, %arg1: i32) -> (i32, i32) {
    %c0_i32 = arith.constant 0 : i32
    %c0_i32_0 = arith.constant 0 : i32
    %c0_i32_1 = arith.constant 0 : i32
    return %c0_i32, %c0_i32_0 : i32, i32
  }
  func.func @transform_4(%arg0: i32, %arg1: i32) -> (i32, i32) {
    %c0_i32 = arith.constant 0 : i32
    %c0_i32_0 = arith.constant 0 : i32
    %c0_i32_1 = arith.constant 0 : i32
    return %c0_i32, %c0_i32_0 : i32, i32
  }
  func.func @transform_5(%arg0: i32, %arg1: i32) -> (i32, i32, i32) {
    %c0_i32 = arith.constant 0 : i32
    %c0_i32_0 = arith.constant 0 : i32
    %c0_i32_1 = arith.constant 0 : i32
    return %arg0, %c0_i32, %c0_i32_0 : i32, i32, i32
  }
}

</mosaic_0001>

<llo_original>
// kernel: tpu_custom_call.1
$region0: #{tpu_custom_call.1}
  #allocation0 [shape = 'u32[]', space=smem, size = 0x4, offset = 0x4, fixed_abs, tag = 'smem constant byte address 0x4 - core index']
  #allocation1 [shape = 'u32[144,128]{1,0:T(1,128)}', space=vmem, size = 0x12000, scoped, tag = 'internal scratch']
  #allocation2 [shape = 'f32[4,256]{1,0:T(4,128)}', space=vmem, size = 0x1000, scoped, tag = 'scratch operand']
  %s0 = inlined_call_operand.vmem [shape: bf16[2,256,4], index: 0, kind: input, shape index: {}]
  %s1 = inlined_call_operand.vmem [shape: f32[2,4,256], index: 1, kind: input, shape index: {}]
  %s2 = inlined_call_operand.vmem [shape: f32[2,8,256], index: 2, kind: input, shape index: {}]
  %s3 = inlined_call_operand.vmem [shape: f32[4,8], index: 3, kind: input, shape index: {}]
  %s4 = inlined_call_operand.vmem [shape: f32[8,4], index: 4, kind: input, shape index: {}]
  %s5 = inlined_call_operand.hbm [shape: f32[2,8,256], index: 5, kind: output, shape index: {}]
  %s6 = sld [smem:[#allocation0]]
  $region61: #{tpu_custom_call.1} parent=0
    _
  %s8 = ssub.s32 1, %s6
  %s9 = scalar_select 0, %s8, %s6
  $region1: #{tpu_custom_call.1} parent=0
    #allocation3 [shape = 'u8[16384]{0}', space=vmem, size = 0x4000, scoped, tag = 'output window, operand 0']
    #allocation4 [shape = 's32[2]{0}', space=sflag, size = 0x8, scoped, tag = 'scoped memory for tpu_custom_call.1']
    %10 = vsyncpa [#allocation4], 0
    %s11 = scalar_lea.sflag [#allocation4], 1
    %12 = vsyncpa %s11, 0
    loop: start=0, step=1, limit=6
    $region2: #{tpu_custom_call.1} parent=1 // loop_pre_header
      _
    $region3: #{tpu_custom_call.1} parent=1 // loop_header
      %s14 = sphi 0, %s18
      %p15 = scmp.ge.s32.totalorder %s14, 6
      %s21 = sphi 0, %s33
      %s22 = sphi 0, %s29
      %s23 = sphi 0, %s21
      %s24 = sphi 0, %s22
      %s25 = sphi 0, %s23
      %s26 = sphi 0, %s24
      %s36 = sphi 0, %s38
      %s39 = sphi 0, %s36
      %s40 = sphi 0, %s39
      %s56 = sphi 0, %s40
      %s64 = sphi 0, %s66
      %s67 = sphi 0, %s64
      %s68 = sphi 0, %s67
      %s84 = sphi 0, %s68
      %s90 = sphi 0, %s92
      %s93 = sphi 0, %s90
      %s94 = sphi 0, %s93
      %s110 = sphi 0, %s94
      %s114 = sphi 0, %s114
      %s116 = sphi 0, %s114
      %s117 = sphi 0, %s116
      %s131 = sphi 0, %s117
      %s135 = sphi 0, %s135
      %s137 = sphi 0, %s135
      %s138 = sphi 0, %s137
      %s152 = sphi 0, %s138
      %s158 = sphi 0, %s160
      %s161 = sphi 0, %s158
      %s162 = sphi 0, %s161
      %s178 = sphi 0, %s162
    $region4: #{tpu_custom_call.1} parent=1 // loop_header_branch
      %17 = sbr.rel (%p15) target = $region8
    $region5: #{tpu_custom_call.1} parent=1 // loop_body
      %s19 = ssub.s32 %s14, 1
      %s20 = ssub.s32 %s14, 2
      %s27 = sadd.s32 1, %s22
      %p28 = scmp.ge.s32.totalorder %s27, 2
      %s29 = scalar_select %p28, 0, %s27
      %s30 = sadd.s32 1, %s21
      %s31 = scalar_select %p28, %s30, %s21
      %p32 = scmp.ge.s32.totalorder %s31, 2
      %s33 = scalar_select %p32, 0, %s31
      %s34 = ssub.s32 %s21, %s33
      %p35 = scmp.eq.s32.totalorder %s34, 0
      %s37 = sadd.s32 %s36, 1
      %s38 = scalar_select %p35, %s36, %s37
      %p41 = pneg %p35
      %p42 = scmp.eq.s32.totalorder %s14, 3
      %p43 = por %p41, %p42
      %p44 = scmp.ne.s32.totalorder %s36, %s39
      %p45 = scmp.eq.s32.totalorder %s14, 0
      %p46 = por %p44, %p45
      %p47 = scmp.ne.s32.totalorder %s36, %s39
      %p48 = scmp.eq.s32.totalorder %s19, 3
      %p49 = por %p47, %p48
      %p50 = scmp.ne.s32.totalorder %s39, %s40
      %p51 = scmp.eq.s32.totalorder %s19, 0
      %p52 = por %p50, %p51
      %p53 = scmp.ne.s32.totalorder %s39, %s40
      %p54 = scmp.eq.s32.totalorder %s20, 3
      %p55 = por %p53, %p54
      %p57 = scmp.ne.s32.totalorder %s40, %s56
      %p58 = scmp.eq.s32.totalorder %s20, 0
      %p59 = por %p57, %p58
      %s60 = ssub.s32 %s21, %s33
      %s61 = ssub.s32 %s22, %s29
      %s62 = sor.u32 %s60, %s61
      %p63 = scmp.eq.s32.totalorder %s62, 0
      %s65 = sadd.s32 %s64, 1
      %s66 = scalar_select %p63, %s64, %s65
      %p69 = pneg %p63
      %p70 = scmp.eq.s32.totalorder %s14, 3
      %p71 = por %p69, %p70
      %p72 = scmp.ne.s32.totalorder %s64, %s67
      %p73 = scmp.eq.s32.totalorder %s14, 0
      %p74 = por %p72, %p73
      %p75 = scmp.ne.s32.totalorder %s64, %s67
      %p76 = scmp.eq.s32.totalorder %s19, 3
      %p77 = por %p75, %p76
      %p78 = scmp.ne.s32.totalorder %s67, %s68
      %p79 = scmp.eq.s32.totalorder %s19, 0
      %p80 = por %p78, %p79
      %p81 = scmp.ne.s32.totalorder %s67, %s68
      %p82 = scmp.eq.s32.totalorder %s20, 3
      %p83 = por %p81, %p82
      %p85 = scmp.ne.s32.totalorder %s68, %s84
      %p86 = scmp.eq.s32.totalorder %s20, 0
      %p87 = por %p85, %p86
      %s88 = ssub.s32 %s21, %s33
      %p89 = scmp.eq.s32.totalorder %s88, 0
      %s91 = sadd.s32 %s90, 1
      %s92 = scalar_select %p89, %s90, %s91
      %p95 = pneg %p89
      %p96 = scmp.eq.s32.totalorder %s14, 3
      %p97 = por %p95, %p96
      %p98 = scmp.ne.s32.totalorder %s90, %s93
      %p99 = scmp.eq.s32.totalorder %s14, 0
      %p100 = por %p98, %p99
      %p101 = scmp.ne.s32.totalorder %s90, %s93
      %p102 = scmp.eq.s32.totalorder %s19, 3
      %p103 = por %p101, %p102
      %p104 = scmp.ne.s32.totalorder %s93, %s94
      %p105 = scmp.eq.s32.totalorder %s19, 0
      %p106 = por %p104, %p105
      %p107 = scmp.ne.s32.totalorder %s93, %s94
      %p108 = scmp.eq.s32.totalorder %s20, 3
      %p109 = por %p107, %p108
      %p111 = scmp.ne.s32.totalorder %s94, %s110
      %p112 = scmp.eq.s32.totalorder %s20, 0
      %p113 = por %p111, %p112
      %s115 = sadd.s32 %s114, 1
      %p118 = scmp.eq.s32.totalorder %s14, 3
      %p119 = scmp.ne.s32.totalorder %s114, %s116
      %p120 = scmp.eq.s32.totalorder %s14, 0
      %p121 = por %p119, %p120
      %p122 = scmp.ne.s32.totalorder %s114, %s116
      %p123 = scmp.eq.s32.totalorder %s19, 3
      %p124 = por %p122, %p123
      %p125 = scmp.ne.s32.totalorder %s116, %s117
      %p126 = scmp.eq.s32.totalorder %s19, 0
      %p127 = por %p125, %p126
      %p128 = scmp.ne.s32.totalorder %s116, %s117
      %p129 = scmp.eq.s32.totalorder %s20, 3
      %p130 = por %p128, %p129
      %p132 = scmp.ne.s32.totalorder %s117, %s131
      %p133 = scmp.eq.s32.totalorder %s20, 0
      %p134 = por %p132, %p133
      %s136 = sadd.s32 %s135, 1
      %p139 = scmp.eq.s32.totalorder %s14, 3
      %p140 = scmp.ne.s32.totalorder %s135, %s137
      %p141 = scmp.eq.s32.totalorder %s14, 0
      %p142 = por %p140, %p141
      %p143 = scmp.ne.s32.totalorder %s135, %s137
      %p144 = scmp.eq.s32.totalorder %s19, 3
      %p145 = por %p143, %p144
      %p146 = scmp.ne.s32.totalorder %s137, %s138
      %p147 = scmp.eq.s32.totalorder %s19, 0
      %p148 = por %p146, %p147
      %p149 = scmp.ne.s32.totalorder %s137, %s138
      %p150 = scmp.eq.s32.totalorder %s20, 3
      %p151 = por %p149, %p150
      %p153 = scmp.ne.s32.totalorder %s138, %s152
      %p154 = scmp.eq.s32.totalorder %s20, 0
      %p155 = por %p153, %p154
      %s156 = ssub.s32 %s21, %s33
      %p157 = scmp.eq.s32.totalorder %s156, 0
      %s159 = sadd.s32 %s158, 1
      %s160 = scalar_select %p157, %s158, %s159
      %p163 = pneg %p157
      %p164 = scmp.eq.s32.totalorder %s14, 3
      %p165 = por %p163, %p164
      %p166 = scmp.ne.s32.totalorder %s158, %s161
      %p167 = scmp.eq.s32.totalorder %s14, 0
      %p168 = por %p166, %p167
      %p169 = scmp.ne.s32.totalorder %s158, %s161
      %p170 = scmp.eq.s32.totalorder %s19, 3
      %p171 = por %p169, %p170
      %p172 = scmp.ne.s32.totalorder %s161, %s162
      %p173 = scmp.eq.s32.totalorder %s19, 0
      %p174 = por %p172, %p173
      %p175 = scmp.ne.s32.totalorder %s161, %s162
      %p176 = scmp.eq.s32.totalorder %s20, 3
      %p177 = por %p175, %p176
      %p179 = scmp.ne.s32.totalorder %s162, %s178
      %p180 = scmp.eq.s32.totalorder %s20, 0
      %p181 = por %p179, %p180
      %p182 = scmp.le.s32.totalorder 1, %s14
      %p183 = scmp.lt.s32.totalorder %s14, 5
      %p184 = pnand %p182, %p183
      %p185 = pneg %p184
      // Predicated region
      $region9: #{tpu_custom_call.1} parent=5 // pred_check
        _
      $region10: #{tpu_custom_call.1} parent=5 // pred_check_branch
        %187 = sbr.rel (%p184) target = $region12
      $region11: #{tpu_custom_call.1} parent=5 // pred_region
        %s188 = ssub.s32 %s14, 1
        // Predicated region
        $region13: #{tpu_custom_call.1} parent=11 // pred_check
          %p189 = pneg %p127
        $region14: #{tpu_custom_call.1} parent=11 // pred_check_branch
          %191 = sbr.rel (%p189) target = $region16
        $region15: #{tpu_custom_call.1} parent=11 // pred_region
          _
        $region16: #{tpu_custom_call.1} parent=11 // pred_fallthru
          _
        // Predicated region
        $region17: #{tpu_custom_call.1} parent=11 // pred_check
          %p192 = pneg %p148
        $region18: #{tpu_custom_call.1} parent=11 // pred_check_branch
          %194 = sbr.rel (%p192) target = $region20
        $region19: #{tpu_custom_call.1} parent=11 // pred_region
          _
        $region20: #{tpu_custom_call.1} parent=11 // pred_fallthru
          _
      $region12: #{tpu_custom_call.1} parent=5 // pred_fallthru
        _
      %p195 = scmp.lt.s32.totalorder %s14, 4
      // Predicated region
      $region21: #{tpu_custom_call.1} parent=5 // pred_check
        %p196 = pneg %p195
      $region22: #{tpu_custom_call.1} parent=5 // pred_check_branch
        %198 = sbr.rel (%p196) target = $region24
      $region23: #{tpu_custom_call.1} parent=5 // pred_region
        // Predicated region
        $region25: #{tpu_custom_call.1} parent=23 // pred_check
          %p199 = pneg %p46
        $region26: #{tpu_custom_call.1} parent=23 // pred_check_branch
          %201 = sbr.rel (%p199) target = $region28
        $region27: #{tpu_custom_call.1} parent=23 // pred_region
          %p202 = scmp.lt.s32.totalorder %s21, 1
          %s203 = scalar_select %p202, %s21, 1
          %s204 = smul.addr %s203, 32
          %s205 = smul.addr %s204, 4
          %s206 = scalar_lea.vmem %s0, %s205
        $region28: #{tpu_custom_call.1} parent=23 // pred_fallthru
          _
        // Predicated region
        $region29: #{tpu_custom_call.1} parent=23 // pred_check
          %p207 = pneg %p74
        $region30: #{tpu_custom_call.1} parent=23 // pred_check_branch
          %209 = sbr.rel (%p207) target = $region32
        $region31: #{tpu_custom_call.1} parent=23 // pred_region
          %p210 = scmp.lt.s32.totalorder %s21, 1
          %s211 = scalar_select %p210, %s21, 1
          %p212 = scmp.lt.s32.totalorder %s22, 1
          %s213 = scalar_select %p212, %s22, 1
          %s214 = smul.addr %s211, 2
          %s215 = sadd.s32 %s213, %s214
          %s216 = smul.addr %s215, 4
          %s217 = scalar_lea.vmem %s1, %s216
        $region32: #{tpu_custom_call.1} parent=23 // pred_fallthru
          _
        // Predicated region
        $region33: #{tpu_custom_call.1} parent=23 // pred_check
          %p218 = pneg %p100
        $region34: #{tpu_custom_call.1} parent=23 // pred_check_branch
          %220 = sbr.rel (%p218) target = $region36
        $region35: #{tpu_custom_call.1} parent=23 // pred_region
          %p221 = scmp.lt.s32.totalorder %s21, 1
          %s222 = scalar_select %p221, %s21, 1
          %s223 = smul.addr %s222, 2
          %s224 = smul.addr %s223, 8
          %s225 = scalar_lea.vmem %s2, %s224
        $region36: #{tpu_custom_call.1} parent=23 // pred_fallthru
          _
      $region24: #{tpu_custom_call.1} parent=5 // pred_fallthru
        _
      %p226 = scmp.le.s32.totalorder 1, %s14
      %p227 = scmp.lt.s32.totalorder %s14, 5
      %p228 = pnand %p226, %p227
      %p229 = pneg %p228
      // Predicated region
      $region37: #{tpu_custom_call.1} parent=5 // pred_check
        _
      $region38: #{tpu_custom_call.1} parent=5 // pred_check_branch
        %231 = sbr.rel (%p228) target = $region40
      $region39: #{tpu_custom_call.1} parent=5 // pred_region
        %s232 = ssub.s32 %s14, 1
        %p233 = scmp.lt.s32.totalorder %s23, 1
        %s234 = scalar_select %p233, %s23, 1
        %s235 = smul.addr %s234, 32
        %s236 = smul.addr %s235, 4
        %s237 = scalar_lea.vmem %s0, %s236
        %p238 = pneg %p52
        %p239 = pneg %p49
        %p240 = scmp.lt.s32.totalorder %s23, 1
        %s241 = scalar_select %p240, %s23, 1
        %p242 = scmp.lt.s32.totalorder %s24, 1
        %s243 = scalar_select %p242, %s24, 1
        %s244 = smul.addr %s241, 2
        %s245 = sadd.s32 %s243, %s244
        %s246 = smul.addr %s245, 4
        %s247 = scalar_lea.vmem %s1, %s246
        %p248 = pneg %p80
        %p249 = pneg %p77
        %p250 = scmp.lt.s32.totalorder %s23, 1
        %s251 = scalar_select %p250, %s23, 1
        %s252 = smul.addr %s251, 2
        %s253 = smul.addr %s252, 8
        %s254 = scalar_lea.vmem %s2, %s253
        %p255 = pneg %p106
        %p256 = pneg %p103
        %p257 = pneg %p127
        %p258 = pneg %p124
        %p259 = pneg %p148
        %p260 = pneg %p145
        %p261 = pneg %p174
        %p262 = pneg %p171
        %s263 = sand.u32 %s161, 1
        %s264 = scalar_lea.sflag [#allocation4], %s263
        %s265 = sand.u32 %s161, 1
        %s266 = smul.addr %s265, 16
        %s267 = scalar_lea.vmem [#allocation3], %s266
        %p268 = scmp.lt.s32.totalorder %s23, 1
        %s269 = scalar_select %p268, %s23, 1
        %s270 = smul.addr %s269, 32
        %s271 = smul.addr %s270, 4
        %s272 = scalar_lea.vmem %s0, %s271
        %p273 = scmp.lt.s32.totalorder %s23, 1
        %s274 = scalar_select %p273, %s23, 1
        %p275 = scmp.lt.s32.totalorder %s24, 1
        %s276 = scalar_select %p275, %s24, 1
        %s277 = smul.addr %s274, 2
        %s278 = sadd.s32 %s276, %s277
        %s279 = smul.addr %s278, 4
        %s280 = scalar_lea.vmem %s1, %s279
        %p281 = scmp.lt.s32.totalorder %s23, 1
        %s282 = scalar_select %p281, %s23, 1
        %s283 = smul.addr %s282, 2
        %s284 = smul.addr %s283, 8
        %s285 = scalar_lea.vmem %s2, %s284
        %p287 = scmp.eq.s32.totalorder %s24, 0
        // Predicated region
        $region41: #{tpu_custom_call.1} parent=39 // pred_check
          %p288 = pneg %p287
        $region42: #{tpu_custom_call.1} parent=39 // pred_check_branch
          %290 = sbr.rel (%p288) target = $region44
        $region43: #{tpu_custom_call.1} parent=39 // pred_region
          %291 = vst [vmem:[#allocation2] sm:$0xff] 0.0
        $region44: #{tpu_custom_call.1} parent=39 // pred_fallthru
          _
        %v292 = vld [vmem:[%s272] sm:$0xf]
        %v293 = vld [vmem:[%s272 + $0x4] sm:$0xf]
        %v294 = vld [vmem:[%s272 + $0x8] sm:$0xf]
        %v295 = vld [vmem:[%s272 + $0xc] sm:$0xf]
        %v296 = vld [vmem:[%s272 + $0x10] sm:$0xf]
        %v297 = vld [vmem:[%s272 + $0x14] sm:$0xf]
        %v298 = vld [vmem:[%s272 + $0x18] sm:$0xf]
        %v299 = vld [vmem:[%s272 + $0x1c] sm:$0xf]
        %v300 = vld [vmem:[%s272 + $0x20] sm:$0xf]
        %v301 = vld [vmem:[%s272 + $0x24] sm:$0xf]
        %v302 = vld [vmem:[%s272 + $0x28] sm:$0xf]
        %v303 = vld [vmem:[%s272 + $0x2c] sm:$0xf]
        %v304 = vld [vmem:[%s272 + $0x30] sm:$0xf]
        %v305 = vld [vmem:[%s272 + $0x34] sm:$0xf]
        %v306 = vld [vmem:[%s272 + $0x38] sm:$0xf]
        %v307 = vld [vmem:[%s272 + $0x3c] sm:$0xf]
        %v308 = vld [vmem:[%s272 + $0x40] sm:$0xf]
        %v309 = vld [vmem:[%s272 + $0x44] sm:$0xf]
        %v310 = vld [vmem:[%s272 + $0x48] sm:$0xf]
        %v311 = vld [vmem:[%s272 + $0x4c] sm:$0xf]
        %v312 = vld [vmem:[%s272 + $0x50] sm:$0xf]
        %v313 = vld [vmem:[%s272 + $0x54] sm:$0xf]
        %v314 = vld [vmem:[%s272 + $0x58] sm:$0xf]
        %v315 = vld [vmem:[%s272 + $0x5c] sm:$0xf]
        %v316 = vld [vmem:[%s272 + $0x60] sm:$0xf]
        %v317 = vld [vmem:[%s272 + $0x64] sm:$0xf]
        %v318 = vld [vmem:[%s272 + $0x68] sm:$0xf]
        %v319 = vld [vmem:[%s272 + $0x6c] sm:$0xf]
        %v320 = vld [vmem:[%s272 + $0x70] sm:$0xf]
        %v321 = vld [vmem:[%s272 + $0x74] sm:$0xf]
        %v322 = vld [vmem:[%s272 + $0x78] sm:$0xf]
        %v323 = vld [vmem:[%s272 + $0x7c] sm:$0xf]
        %v324 = vld [vmem:[%s280] sm:$0xf]
        %v325 = vpack.c.bf16 %v324, %v324
        %v358 = vunpack.c.l.b16 %v292
        %v359 = vunpack.c.l.b16 %v293
        %v360 = vunpack.c.l.b16 %v294
        %v361 = vunpack.c.l.b16 %v295
        %v362 = vunpack.c.l.b16 %v296
        %v363 = vunpack.c.l.b16 %v297
        %v364 = vunpack.c.l.b16 %v298
        %v365 = vunpack.c.l.b16 %v299
        %v366 = vunpack.c.l.b16 %v300
        %v367 = vunpack.c.l.b16 %v301
        %v368 = vunpack.c.l.b16 %v302
        %v369 = vunpack.c.l.b16 %v303
        %v370 = vunpack.c.l.b16 %v304
        %v371 = vunpack.c.l.b16 %v305
        %v372 = vunpack.c.l.b16 %v306
        %v373 = vunpack.c.l.b16 %v307
        %v374 = vunpack.c.l.b16 %v308
        %v375 = vunpack.c.l.b16 %v309
        %v376 = vunpack.c.l.b16 %v310
        %v377 = vunpack.c.l.b16 %v311
        %v378 = vunpack.c.l.b16 %v312
        %v379 = vunpack.c.l.b16 %v313
        %v380 = vunpack.c.l.b16 %v314
        %v381 = vunpack.c.l.b16 %v315
        %v382 = vunpack.c.l.b16 %v316
        %v383 = vunpack.c.l.b16 %v317
        %v384 = vunpack.c.l.b16 %v318
        %v385 = vunpack.c.l.b16 %v319
        %v386 = vunpack.c.l.b16 %v320
        %v387 = vunpack.c.l.b16 %v321
        %v388 = vunpack.c.l.b16 %v322
        %v389 = vunpack.c.l.b16 %v323
        %v390 = vpack.c.b16 %v359, %v358
        %v391 = vpack.c.b16 %v361, %v360
        %v392 = vpack.c.b16 %v363, %v362
        %v393 = vpack.c.b16 %v365, %v364
        %v394 = vpack.c.b16 %v367, %v366
        %v395 = vpack.c.b16 %v369, %v368
        %v396 = vpack.c.b16 %v371, %v370
        %v397 = vpack.c.b16 %v373, %v372
        %v398 = vpack.c.b16 %v375, %v374
        %v399 = vpack.c.b16 %v377, %v376
        %v400 = vpack.c.b16 %v379, %v378
        %v401 = vpack.c.b16 %v381, %v380
        %v402 = vpack.c.b16 %v383, %v382
        %v403 = vpack.c.b16 %v385, %v384
        %v404 = vpack.c.b16 %v387, %v386
        %v405 = vpack.c.b16 %v389, %v388
        %vm406 = vcmask 31744
        %v408 = vsel %vm406, %v390, 0
        %v411 = vsel %vm406, %v391, 0
        %v414 = vsel %vm406, %v392, 0
        %v417 = vsel %vm406, %v393, 0
        %v420 = vsel %vm406, %v394, 0
        %v423 = vsel %vm406, %v395, 0
        %v426 = vsel %vm406, %v396, 0
        %v429 = vsel %vm406, %v397, 0
        %v432 = vsel %vm406, %v398, 0
        %v435 = vsel %vm406, %v399, 0
        %v438 = vsel %vm406, %v400, 0
        %v441 = vsel %vm406, %v401, 0
        %v444 = vsel %vm406, %v402, 0
        %v447 = vsel %vm406, %v403, 0
        %v450 = vsel %vm406, %v404, 0
        %v453 = vsel %vm406, %v405, 0
        %vm455 = vcmask 1041408
        %v457 = vsel %vm455, %v325, 0
        %459 = vmatprep.subr.bf16.mxu0 0
        %460 = vmatpush1.bf16.msra.mxu0 %v457
        %461 = vmatprep.subr.bf16.mxu0 0
        %462 = vmatpush1.bf16.msra.mxu0 0
        %463 = vmatprep.subr.bf16.mxu0 0
        %464 = vmatpush1.bf16.msra.mxu0 0
        %465 = vmatprep.subr.bf16.mxu0 0
        %466 = vmatpush1.bf16.msra.mxu0 0
        %467 = vmatprep.subr.bf16.mxu0 0
        %468 = vmatpush1.bf16.msra.mxu0 0
        %469 = vmatprep.subr.bf16.mxu0 0
        %470 = vmatpush1.bf16.msra.mxu0 0
        %471 = vmatprep.subr.bf16.mxu0 0
        %472 = vmatpush1.bf16.msra.mxu0 0
        %473 = vmatprep.subr.bf16.mxu0 0
        %474 = vmatpush1.bf16.msra.mxu0 0
        %475 = vmatprep.subr.bf16.mxu0 0
        %476 = vmatpush1.bf16.msra.mxu0 0
        %477 = vmatprep.subr.bf16.mxu0 0
        %478 = vmatpush1.bf16.msra.mxu0 0
        %479 = vmatprep.subr.bf16.mxu0 0
        %480 = vmatpush1.bf16.msra.mxu0 0
        %481 = vmatprep.subr.bf16.mxu0 0
        %482 = vmatpush1.bf16.msra.mxu0 0
        %483 = vmatprep.subr.bf16.mxu0 0
        %484 = vmatpush1.bf16.msra.mxu0 0
        %485 = vmatprep.subr.bf16.mxu0 0
        %486 = vmatpush1.bf16.msra.mxu0 0
        %487 = vmatprep.subr.bf16.mxu0 0
        %488 = vmatpush1.bf16.msra.mxu0 0
        %489 = vmatprep.subr.bf16.mxu0 0
        %490 = vmatpush1.bf16.msra.mxu0 0
        %491 = vmatprep.mubr.bf16.mxu0 0
        %492 = vmatmul.mubr.bf16.gmra.mrb[0].mxu0 %v408
        %v493 = vpop.f32.mrb[0].mxu0
        %v494 = vadd.f32 0.0, %v493
        %v495 = vpop.f32.mrb[0].mxu0
        %v496 = vpop.f32.mrb[0].mxu0
        %v497 = vadd.f32 0.0, %v496
        %v498 = vpop.f32.mrb[0].mxu0
        %499 = vmatprep.mubr.bf16.mxu0 0
        %500 = vmatmul.mubr.bf16.gmra.mrb[0].mxu0 %v411
        %v501 = vpop.f32.mrb[0].mxu0
        %v502 = vadd.f32 0.0, %v501
        %v503 = vpop.f32.mrb[0].mxu0
        %v504 = vpop.f32.mrb[0].mxu0
        %v505 = vadd.f32 0.0, %v504
        %v506 = vpop.f32.mrb[0].mxu0
        %507 = vmatprep.mubr.bf16.mxu0 0
        %508 = vmatmul.mubr.bf16.gmra.mrb[0].mxu0 %v414
        %v509 = vpop.f32.mrb[0].mxu0
        %v510 = vadd.f32 0.0, %v509
        %v511 = vpop.f32.mrb[0].mxu0
        %v512 = vpop.f32.mrb[0].mxu0
        %v513 = vadd.f32 0.0, %v512
        %v514 = vpop.f32.mrb[0].mxu0
        %515 = vmatprep.mubr.bf16.mxu0 0
        %516 = vmatmul.mubr.bf16.gmra.mrb[0].mxu0 %v417
        %v517 = vpop.f32.mrb[0].mxu0
        %v518 = vadd.f32 0.0, %v517
        %v519 = vpop.f32.mrb[0].mxu0
        %v520 = vpop.f32.mrb[0].mxu0
        %v521 = vadd.f32 0.0, %v520
        %v522 = vpop.f32.mrb[0].mxu0
        %523 = vmatprep.mubr.bf16.mxu0 0
        %524 = vmatmul.mubr.bf16.gmra.mrb[0].mxu0 %v420
        %v525 = vpop.f32.mrb[0].mxu0
        %v526 = vadd.f32 0.0, %v525
        %v527 = vpop.f32.mrb[0].mxu0
        %v528 = vpop.f32.mrb[0].mxu0
        %v529 = vadd.f32 0.0, %v528
        %v530 = vpop.f32.mrb[0].mxu0
        %531 = vmatprep.mubr.bf16.mxu0 0
        %532 = vmatmul.mubr.bf16.gmra.mrb[0].mxu0 %v423
        %v533 = vpop.f32.mrb[0].mxu0
        %v534 = vadd.f32 0.0, %v533
        %v535 = vpop.f32.mrb[0].mxu0
        %v536 = vpop.f32.mrb[0].mxu0
        %v537 = vadd.f32 0.0, %v536
        %v538 = vpop.f32.mrb[0].mxu0
        %539 = vmatprep.mubr.bf16.mxu0 0
        %540 = vmatmul.mubr.bf16.gmra.mrb[0].mxu0 %v426
        %v541 = vpop.f32.mrb[0].mxu0
        %v542 = vadd.f32 0.0, %v541
        %v543 = vpop.f32.mrb[0].mxu0
        %v544 = vpop.f32.mrb[0].mxu0
        %v545 = vadd.f32 0.0, %v544
        %v546 = vpop.f32.mrb[0].mxu0
        %547 = vmatprep.mubr.bf16.mxu0 0
        %548 = vmatmul.mubr.bf16.gmra.mrb[0].mxu0 %v429
        %v549 = vpop.f32.mrb[0].mxu0
        %v550 = vadd.f32 0.0, %v549
        %v551 = vpop.f32.mrb[0].mxu0
        %v552 = vpop.f32.mrb[0].mxu0
        %v553 = vadd.f32 0.0, %v552
        %v554 = vpop.f32.mrb[0].mxu0
        %555 = vmatprep.mubr.bf16.mxu0 0
        %556 = vmatmul.mubr.bf16.gmra.mrb[0].mxu0 %v432
        %v557 = vpop.f32.mrb[0].mxu0
        %v558 = vadd.f32 0.0, %v557
        %v559 = vpop.f32.mrb[0].mxu0
        %v560 = vpop.f32.mrb[0].mxu0
        %v561 = vadd.f32 0.0, %v560
        %v562 = vpop.f32.mrb[0].mxu0
        %563 = vmatprep.mubr.bf16.mxu0 0
        %564 = vmatmul.mubr.bf16.gmra.mrb[0].mxu0 %v435
        %v565 = vpop.f32.mrb[0].mxu0
        %v566 = vadd.f32 0.0, %v565
        %v567 = vpop.f32.mrb[0].mxu0
        %v568 = vpop.f32.mrb[0].mxu0
        %v569 = vadd.f32 0.0, %v568
        %v570 = vpop.f32.mrb[0].mxu0
        %571 = vmatprep.mubr.bf16.mxu0 0
        %572 = vmatmul.mubr.bf16.gmra.mrb[0].mxu0 %v438
        %v573 = vpop.f32.mrb[0].mxu0
        %v574 = vadd.f32 0.0, %v573
        %v575 = vpop.f32.mrb[0].mxu0
        %v576 = vpop.f32.mrb[0].mxu0
        %v577 = vadd.f32 0.0, %v576
        %v578 = vpop.f32.mrb[0].mxu0
        %579 = vmatprep.mubr.bf16.mxu0 0
        %580 = vmatmul.mubr.bf16.gmra.mrb[0].mxu0 %v441
        %v581 = vpop.f32.mrb[0].mxu0
        %v582 = vadd.f32 0.0, %v581
        %v583 = vpop.f32.mrb[0].mxu0
        %v584 = vpop.f32.mrb[0].mxu0
        %v585 = vadd.f32 0.0, %v584
        %v586 = vpop.f32.mrb[0].mxu0
        %587 = vmatprep.mubr.bf16.mxu0 0
        %588 = vmatmul.mubr.bf16.gmra.mrb[0].mxu0 %v444
        %v589 = vpop.f32.mrb[0].mxu0
        %v590 = vadd.f32 0.0, %v589
        %v591 = vpop.f32.mrb[0].mxu0
        %v592 = vpop.f32.mrb[0].mxu0
        %v593 = vadd.f32 0.0, %v592
        %v594 = vpop.f32.mrb[0].mxu0
        %595 = vmatprep.mubr.bf16.mxu0 0
        %596 = vmatmul.mubr.bf16.gmra.mrb[0].mxu0 %v447
        %v597 = vpop.f32.mrb[0].mxu0
        %v598 = vadd.f32 0.0, %v597
        %v599 = vpop.f32.mrb[0].mxu0
        %v600 = vpop.f32.mrb[0].mxu0
        %v601 = vadd.f32 0.0, %v600
        %v602 = vpop.f32.mrb[0].mxu0
        %603 = vmatprep.mubr.bf16.mxu0 0
        %604 = vmatmul.mubr.bf16.gmra.mrb[0].mxu0 %v450
        %v605 = vpop.f32.mrb[0].mxu0
        %v606 = vadd.f32 0.0, %v605
        %v607 = vpop.f32.mrb[0].mxu0
        %v608 = vpop.f32.mrb[0].mxu0
        %v609 = vadd.f32 0.0, %v608
        %v610 = vpop.f32.mrb[0].mxu0
        %611 = vmatprep.mubr.bf16.mxu0 0
        %612 = vmatmul.mubr.bf16.gmra.mrb[0].mxu0 %v453
        %v613 = vpop.f32.mrb[0].mxu0
        %v614 = vadd.f32 0.0, %v613
        %v615 = vpop.f32.mrb[0].mxu0
        %v616 = vpop.f32.mrb[0].mxu0
        %v617 = vadd.f32 0.0, %v616
        %v618 = vpop.f32.mrb[0].mxu0
        %619 = vdwg.mxu0
        %v620 = vmax.f32 %v494, %v510
        %v621 = vmax.f32 %v497, %v513
        %v622 = vmax.f32 %v502, %v518
        %v623 = vmax.f32 %v505, %v521
        %v624 = vmax.f32 %v620, %v526
        %v625 = vmax.f32 %v621, %v529
        %v626 = vmax.f32 %v622, %v534
        %v627 = vmax.f32 %v623, %v537
        %v628 = vmax.f32 %v624, %v542
        %v629 = vmax.f32 %v625, %v545
        %v630 = vmax.f32 %v626, %v550
        %v631 = vmax.f32 %v627, %v553
        %v632 = vmax.f32 %v628, %v558
        %v633 = vmax.f32 %v629, %v561
        %v634 = vmax.f32 %v630, %v566
        %v635 = vmax.f32 %v631, %v569
        %v636 = vmax.f32 %v632, %v574
        %v637 = vmax.f32 %v633, %v577
        %v638 = vmax.f32 %v634, %v582
        %v639 = vmax.f32 %v635, %v585
        %v640 = vmax.f32 %v636, %v590
        %v641 = vmax.f32 %v637, %v593
        %v642 = vmax.f32 %v638, %v598
        %v643 = vmax.f32 %v639, %v601
        %v644 = vmax.f32 %v640, %v606
        %v645 = vmax.f32 %v641, %v609
        %v646 = vmax.f32 %v642, %v614
        %v647 = vmax.f32 %v643, %v617
        %v648 = vmax.f32 %v644, %v645
        %v649 = vmax.f32 %v646, %v647
        %v650 = vmax.f32 %v648, %v649
        %v651 = vrot.slane %v650, 4
        %v652 = vmax.f32 %v650, %v651
        %v653 = vrot.slane %v652, 2
        %v654 = vmax.f32 %v652, %v653
        %v655 = vrot.slane %v654, 1
        %v656 = vmax.f32 %v654, %v655
        %v657 = vsub.f32 %v494, %v656
        %v658 = vsub.f32 %v497, %v656
        %v659 = vsub.f32 %v502, %v656
        %v660 = vsub.f32 %v505, %v656
        %v661 = vsub.f32 %v510, %v656
        %v662 = vsub.f32 %v513, %v656
        %v663 = vsub.f32 %v518, %v656
        %v664 = vsub.f32 %v521, %v656
        %v665 = vsub.f32 %v526, %v656
        %v666 = vsub.f32 %v529, %v656
        %v667 = vsub.f32 %v534, %v656
        %v668 = vsub.f32 %v537, %v656
        %v669 = vsub.f32 %v542, %v656
        %v670 = vsub.f32 %v545, %v656
        %v671 = vsub.f32 %v550, %v656
        %v672 = vsub.f32 %v553, %v656
        %v673 = vsub.f32 %v558, %v656
        %v674 = vsub.f32 %v561, %v656
        %v675 = vsub.f32 %v566, %v656
        %v676 = vsub.f32 %v569, %v656
        %v677 = vsub.f32 %v574, %v656
        %v678 = vsub.f32 %v577, %v656
        %v679 = vsub.f32 %v582, %v656
        %v680 = vsub.f32 %v585, %v656
        %v681 = vsub.f32 %v590, %v656
        %v682 = vsub.f32 %v593, %v656
        %v683 = vsub.f32 %v598, %v656
        %v684 = vsub.f32 %v601, %v656
        %v685 = vsub.f32 %v606, %v656
        %v686 = vsub.f32 %v609, %v656
        %v687 = vsub.f32 %v614, %v656
        %v688 = vsub.f32 %v617, %v656
        %v689 = vmul.f32 %v657, 1.442695
        %v690 = vpow.pop %v689
        %v691 = vmul.f32 %v658, 1.442695
        %v692 = vpow.pop %v691
        %v693 = vmul.f32 %v659, 1.442695
        %v694 = vpow.pop %v693
        %v695 = vmul.f32 %v660, 1.442695
        %v696 = vpow.pop %v695
        %v697 = vmul.f32 %v661, 1.442695
        %v698 = vpow.pop %v697
        %v699 = vmul.f32 %v662, 1.442695
        %v700 = vpow.pop %v699
        %v701 = vmul.f32 %v663, 1.442695
        %v702 = vpow.pop %v701
        %v703 = vmul.f32 %v664, 1.442695
        %v704 = vpow.pop %v703
        %v705 = vmul.f32 %v665, 1.442695
        %v706 = vpow.pop %v705
        %v707 = vmul.f32 %v666, 1.442695
        %v708 = vpow.pop %v707
        %v709 = vmul.f32 %v667, 1.442695
        %v710 = vpow.pop %v709
        %v711 = vmul.f32 %v668, 1.442695
        %v712 = vpow.pop %v711
        %v713 = vmul.f32 %v669, 1.442695
        %v714 = vpow.pop %v713
        %v715 = vmul.f32 %v670, 1.442695
        %v716 = vpow.pop %v715
        %v717 = vmul.f32 %v671, 1.442695
        %v718 = vpow.pop %v717
        %v719 = vmul.f32 %v672, 1.442695
        %v720 = vpow.pop %v719
        %v721 = vmul.f32 %v673, 1.442695
        %v722 = vpow.pop %v721
        %v723 = vmul.f32 %v674, 1.442695
        %v724 = vpow.pop %v723
        %v725 = vmul.f32 %v675, 1.442695
        %v726 = vpow.pop %v725
        %v727 = vmul.f32 %v676, 1.442695
        %v728 = vpow.pop %v727
        %v729 = vmul.f32 %v677, 1.442695
        %v730 = vpow.pop %v729
        %v731 = vmul.f32 %v678, 1.442695
        %v732 = vpow.pop %v731
        %v733 = vmul.f32 %v679, 1.442695
        %v734 = vpow.pop %v733
        %v735 = vmul.f32 %v680, 1.442695
        %v736 = vpow.pop %v735
        %v737 = vmul.f32 %v681, 1.442695
        %v738 = vpow.pop %v737
        %v739 = vmul.f32 %v682, 1.442695
        %v740 = vpow.pop %v739
        %v741 = vmul.f32 %v683, 1.442695
        %v742 = vpow.pop %v741
        %v743 = vmul.f32 %v684, 1.442695
        %v744 = vpow.pop %v743
        %v745 = vmul.f32 %v685, 1.442695
        %v746 = vpow.pop %v745
        %v747 = vmul.f32 %v686, 1.442695
        %v748 = vpow.pop %v747
        %v749 = vmul.f32 %v687, 1.442695
        %v750 = vpow.pop %v749
        %v751 = vmul.f32 %v688, 1.442695
        %v752 = vpow.pop %v751
        %v753 = vadd.f32 %v690, %v692
        %v754 = vadd.f32 %v753, %v694
        %v755 = vadd.f32 %v754, %v696
        %v756 = vadd.f32 %v755, %v698
        %v757 = vadd.f32 %v756, %v700
        %v758 = vadd.f32 %v757, %v702
        %v759 = vadd.f32 %v758, %v704
        %v760 = vadd.f32 %v759, %v706
        %v761 = vadd.f32 %v760, %v708
        %v762 = vadd.f32 %v761, %v710
        %v763 = vadd.f32 %v762, %v712
        %v764 = vadd.f32 %v763, %v714
        %v765 = vadd.f32 %v764, %v716
        %v766 = vadd.f32 %v765, %v718
        %v767 = vadd.f32 %v766, %v720
        %v768 = vadd.f32 %v767, %v722
        %v769 = vadd.f32 %v768, %v724
        %v770 = vadd.f32 %v769, %v726
        %v771 = vadd.f32 %v770, %v728
        %v772 = vadd.f32 %v771, %v730
        %v773 = vadd.f32 %v772, %v732
        %v774 = vadd.f32 %v773, %v734
        %v775 = vadd.f32 %v774, %v736
        %v776 = vadd.f32 %v775, %v738
        %v777 = vadd.f32 %v776, %v740
        %v778 = vadd.f32 %v777, %v742
        %v779 = vadd.f32 %v778, %v744
        %v780 = vadd.f32 %v779, %v746
        %v781 = vadd.f32 %v780, %v748
        %v782 = vadd.f32 %v781, %v750
        %v783 = vadd.f32 %v782, %v752
        %v784 = vrot.slane %v783, 4
        %v785 = vadd.f32 %v783, %v784
        %v786 = vrot.slane %v785, 2
        %v787 = vadd.f32 %v785, %v786
        %v788 = vrot.slane %v787, 1
        %v789 = vadd.f32 %v787, %v788
        %v790 = vrcp.pop %v789
        %s791 = smul.u32 %s24, 128
        %s792 = sshra.s32 %s791, 7
        %s793 = sand.u32 %s791, 127
        %s794 = smul.addr %s792, 8
        %s795 = scalar_lea.vmem %s285, %s794
        %v796 = vld [vmem:[%s795] sm:$0xff]
        %v797 = vld [vmem:[%s3] sm:$0xf]
        %vm798 = vcmask 64512
        %v800 = vsel %vm798, %v797, 0
        %802 = vmatprep.subr.mxu0 0.0
        %803 = vmatpush1.msra.mxu0 %v796
        %804 = vmatprep.subr.mxu0 0.0
        %805 = vmatpush1.msra.mxu0 0.0
        %806 = vmatprep.subr.mxu0 0.0
        %807 = vmatpush1.msra.mxu0 0.0
        %808 = vmatprep.subr.mxu0 0.0
        %809 = vmatpush1.msra.mxu0 0.0
        %810 = vmatprep.subr.mxu0 0.0
        %811 = vmatpush1.msra.mxu0 0.0
        %812 = vmatprep.subr.mxu0 0.0
        %813 = vmatpush1.msra.mxu0 0.0
        %814 = vmatprep.subr.mxu0 0.0
        %815 = vmatpush1.msra.mxu0 0.0
        %816 = vmatprep.subr.mxu0 0.0
        %817 = vmatpush1.msra.mxu0 0.0
        %818 = vmatprep.subr.mxu0 0.0
        %819 = vmatpush1.msra.mxu0 0.0
        %820 = vmatprep.subr.mxu0 0.0
        %821 = vmatpush1.msra.mxu0 0.0
        %822 = vmatprep.subr.mxu0 0.0
        %823 = vmatpush1.msra.mxu0 0.0
        %824 = vmatprep.subr.mxu0 0.0
        %825 = vmatpush1.msra.mxu0 0.0
        %826 = vmatprep.subr.mxu0 0.0
        %827 = vmatpush1.msra.mxu0 0.0
        %828 = vmatprep.subr.mxu0 0.0
        %829 = vmatpush1.msra.mxu0 0.0
        %830 = vmatprep.subr.mxu0 0.0
        %831 = vmatpush1.msra.mxu0 0.0
        %832 = vmatprep.subr.mxu0 0.0
        %833 = vmatpush1.msra.mxu0 0.0
        %834 = vmatprep.subr.mxu0 0.0
        %835 = vmatpush1.msra.mxu0 0.0
        %836 = vmatprep.subr.mxu0 0.0
        %837 = vmatpush1.msra.mxu0 0.0
        %838 = vmatprep.subr.mxu0 0.0
        %839 = vmatpush1.msra.mxu0 0.0
        %840 = vmatprep.subr.mxu0 0.0
        %841 = vmatpush1.msra.mxu0 0.0
        %842 = vmatprep.subr.mxu0 0.0
        %843 = vmatpush1.msra.mxu0 0.0
        %844 = vmatprep.subr.mxu0 0.0
        %845 = vmatpush1.msra.mxu0 0.0
        %846 = vmatprep.subr.mxu0 0.0
        %847 = vmatpush1.msra.mxu0 0.0
        %848 = vmatprep.subr.mxu0 0.0
        %849 = vmatpush1.msra.mxu0 0.0
        %850 = vmatprep.subr.mxu0 0.0
        %851 = vmatpush1.msra.mxu0 0.0
        %852 = vmatprep.subr.mxu0 0.0
        %853 = vmatpush1.msra.mxu0 0.0
        %854 = vmatprep.subr.mxu0 0.0
        %855 = vmatpush1.msra.mxu0 0.0
        %856 = vmatprep.subr.mxu0 0.0
        %857 = vmatpush1.msra.mxu0 0.0
        %858 = vmatprep.subr.mxu0 0.0
        %859 = vmatpush1.msra.mxu0 0.0
        %860 = vmatprep.subr.mxu0 0.0
        %861 = vmatpush1.msra.mxu0 0.0
        %862 = vmatprep.subr.mxu0 0.0
        %863 = vmatpush1.msra.mxu0 0.0
        %864 = vmatprep.subr.mxu0 0.0
        %865 = vmatpush1.msra.mxu0 0.0
        %866 = vmatprep.mubr.f32.mxu0 0.0
        %867 = vmatmul.mubr.f32.gmra.mrb[0].mxu0 %v800
        %v868 = vpop.f32.mrb[0].mxu0
        %v869 = vadd.f32 0.0, %v868
        %v870 = vpop.f32.mrb[0].mxu0
        %871 = vdwg.mxu0
        %v872 = vmul.f32 %v869, %v790
        %v873 = vpack.c.bf16 %v872, %v872
        %v874 = vld [vmem:[#allocation2] sm:$0xff]
        %v875 = vpack.c.bf16 %v692, %v690
        %v876 = vpack.c.bf16 %v696, %v694
        %v877 = vpack.c.bf16 %v700, %v698
        %v878 = vpack.c.bf16 %v704, %v702
        %v879 = vpack.c.bf16 %v708, %v706
        %v880 = vpack.c.bf16 %v712, %v710
        %v881 = vpack.c.bf16 %v716, %v714
        %v882 = vpack.c.bf16 %v720, %v718
        %v883 = vpack.c.bf16 %v724, %v722
        %v884 = vpack.c.bf16 %v728, %v726
        %v885 = vpack.c.bf16 %v732, %v730
        %v886 = vpack.c.bf16 %v736, %v734
        %v887 = vpack.c.bf16 %v740, %v738
        %v888 = vpack.c.bf16 %v744, %v742
        %v889 = vpack.c.bf16 %v748, %v746
        %v890 = vpack.c.bf16 %v752, %v750
        %891 = vmatprep.subr.bf16.mxu0 0
        %892 = vmatpush1.bf16.xpose.msra.mxu0 %v875
        %893 = vmatprep.subr.bf16.mxu0 0
        %894 = vmatpush1.bf16.xpose.msra.mxu0 %v876
        %895 = vmatprep.subr.bf16.mxu0 0
        %896 = vmatpush1.bf16.xpose.msra.mxu0 %v877
        %897 = vmatprep.subr.bf16.mxu0 0
        %898 = vmatpush1.bf16.xpose.msra.mxu0 %v878
        %899 = vmatprep.subr.bf16.mxu0 0
        %900 = vmatpush1.bf16.xpose.msra.mxu0 %v879
        %901 = vmatprep.subr.bf16.mxu0 0
        %902 = vmatpush1.bf16.xpose.msra.mxu0 %v880
        %903 = vmatprep.subr.bf16.mxu0 0
        %904 = vmatpush1.bf16.xpose.msra.mxu0 %v881
        %905 = vmatprep.subr.bf16.mxu0 0
        %906 = vmatpush1.bf16.xpose.msra.mxu0 %v882
        %907 = vmatprep.subr.bf16.mxu0 0
        %908 = vmatpush1.bf16.xpose.msra.mxu0 %v883
        %909 = vmatprep.subr.bf16.mxu0 0
        %910 = vmatpush1.bf16.xpose.msra.mxu0 %v884
        %911 = vmatprep.subr.bf16.mxu0 0
        %912 = vmatpush1.bf16.xpose.msra.mxu0 %v885
        %913 = vmatprep.subr.bf16.mxu0 0
        %914 = vmatpush1.bf16.xpose.msra.mxu0 %v886
        %915 = vmatprep.subr.bf16.mxu0 0
        %916 = vmatpush1.bf16.xpose.msra.mxu0 %v887
        %917 = vmatprep.subr.bf16.mxu0 0
        %918 = vmatpush1.bf16.xpose.msra.mxu0 %v888
        %919 = vmatprep.subr.bf16.mxu0 0
        %920 = vmatpush1.bf16.xpose.msra.mxu0 %v889
        %921 = vmatprep.subr.bf16.mxu0 0
        %922 = vmatpush1.bf16.xpose.msra.mxu0 %v890
        %923 = vmatprep.mubr.bf16.mxu0 0
        %924 = vmatmul.mubr.bf16.gmra.mrb[0].mxu0 %v873
        %v925 = vpop.f32.mrb[0].mxu0
        %v926 = vadd.f32 0.0, %v925
        %v927 = vpop.f32.mrb[0].mxu0
        %v928 = vadd.f32 0.0, %v927
        %v929 = vpop.f32.mrb[0].mxu0
        %v930 = vpop.f32.mrb[0].mxu0
        %931 = vdwg.mxu0
        %v934 = vcombine.low %v926, %v928
        %v936 = vadd.f32 %v874, %v934
        %937 = vst [vmem:[#allocation2] sm:$0xff] %v936
        %p938 = scmp.eq.s32.totalorder %s24, 1
        // Predicated region
        $region45: #{tpu_custom_call.1} parent=39 // pred_check
          %p939 = pneg %p938
        $region46: #{tpu_custom_call.1} parent=39 // pred_check_branch
          %941 = sbr.rel (%p939) target = $region48
        $region47: #{tpu_custom_call.1} parent=39 // pred_region
          %v942 = vld [vmem:[%s4] sm:$0xff]
          %v943 = vld [vmem:[#allocation2] sm:$0xff]
          %v944 = vld [vmem:[%s285] sm:$0xff]
          %v945 = vld [vmem:[%s285 + $0x8] sm:$0xff]
          %v947 = vcombine.high %v943, %v943
          %v949 = vsel %vm406, %v942, 0
          %vm951 = vcmask 1043456
          %v952 = vsel %vm951, %v943, 0
          %v954 = vsel %vm951, %v947, 0
          %956 = vmatprep.subr.mxu0 %v954
          %957 = vmatpush1.msra.mxu0 %v952
          %958 = vmatprep.subr.mxu0 0.0
          %959 = vmatpush1.msra.mxu0 0.0
          %960 = vmatprep.subr.mxu0 0.0
          %961 = vmatpush1.msra.mxu0 0.0
          %962 = vmatprep.subr.mxu0 0.0
          %963 = vmatpush1.msra.mxu0 0.0
          %964 = vmatprep.subr.mxu0 0.0
          %965 = vmatpush1.msra.mxu0 0.0
          %966 = vmatprep.subr.mxu0 0.0
          %967 = vmatpush1.msra.mxu0 0.0
          %968 = vmatprep.subr.mxu0 0.0
          %969 = vmatpush1.msra.mxu0 0.0
          %970 = vmatprep.subr.mxu0 0.0
          %971 = vmatpush1.msra.mxu0 0.0
          %972 = vmatprep.subr.mxu0 0.0
          %973 = vmatpush1.msra.mxu0 0.0
          %974 = vmatprep.subr.mxu0 0.0
          %975 = vmatpush1.msra.mxu0 0.0
          %976 = vmatprep.subr.mxu0 0.0
          %977 = vmatpush1.msra.mxu0 0.0
          %978 = vmatprep.subr.mxu0 0.0
          %979 = vmatpush1.msra.mxu0 0.0
          %980 = vmatprep.subr.mxu0 0.0
          %981 = vmatpush1.msra.mxu0 0.0
          %982 = vmatprep.subr.mxu0 0.0
          %983 = vmatpush1.msra.mxu0 0.0
          %984 = vmatprep.subr.mxu0 0.0
          %985 = vmatpush1.msra.mxu0 0.0
          %986 = vmatprep.subr.mxu0 0.0
          %987 = vmatpush1.msra.mxu0 0.0
          %988 = vmatprep.subr.mxu0 0.0
          %989 = vmatpush1.msra.mxu0 0.0
          %990 = vmatprep.subr.mxu0 0.0
          %991 = vmatpush1.msra.mxu0 0.0
          %992 = vmatprep.subr.mxu0 0.0
          %993 = vmatpush1.msra.mxu0 0.0
          %994 = vmatprep.subr.mxu0 0.0
          %995 = vmatpush1.msra.mxu0 0.0
          %996 = vmatprep.subr.mxu0 0.0
          %997 = vmatpush1.msra.mxu0 0.0
          %998 = vmatprep.subr.mxu0 0.0
          %999 = vmatpush1.msra.mxu0 0.0
          %1000 = vmatprep.subr.mxu0 0.0
          %1001 = vmatpush1.msra.mxu0 0.0
          %1002 = vmatprep.subr.mxu0 0.0
          %1003 = vmatpush1.msra.mxu0 0.0
          %1004 = vmatprep.subr.mxu0 0.0
          %1005 = vmatpush1.msra.mxu0 0.0
          %1006 = vmatprep.subr.mxu0 0.0
          %1007 = vmatpush1.msra.mxu0 0.0
          %1008 = vmatprep.subr.mxu0 0.0
          %1009 = vmatpush1.msra.mxu0 0.0
          %1010 = vmatprep.subr.mxu0 0.0
          %1011 = vmatpush1.msra.mxu0 0.0
          %1012 = vmatprep.subr.mxu0 0.0
          %1013 = vmatpush1.msra.mxu0 0.0
          %1014 = vmatprep.subr.mxu0 0.0
          %1015 = vmatpush1.msra.mxu0 0.0
          %1016 = vmatprep.subr.mxu0 0.0
          %1017 = vmatpush1.msra.mxu0 0.0
          %1018 = vmatprep.subr.mxu0 0.0
          %1019 = vmatpush1.msra.mxu0 0.0
          %1020 = vmatprep.mubr.f32.mxu0 0.0
          %1021 = vmatmul.mubr.f32.gmra.mrb[0].mxu0 %v949
          %v1022 = vpop.f32.mrb[0].mxu0
          %v1023 = vadd.f32 %v944, %v1022
          %v1024 = vpop.f32.mrb[0].mxu0
          %v1025 = vadd.f32 %v945, %v1024
          %1026 = vdwg.mxu0
          %1027 = vst [vmem:[%s267] sm:$0xff] %v1023
          %1028 = vst [vmem:[%s267 + $0x8] sm:$0xff] %v1025
        $region48: #{tpu_custom_call.1} parent=39 // pred_fallthru
          _
        %s1029 = sand.u32 %s161, 1
        %s1030 = scalar_lea.sflag [#allocation4], %s1029
        %s1031 = sand.u32 %s161, 1
        %s1032 = smul.addr %s1031, 16
        %s1033 = scalar_lea.vmem [#allocation3], %s1032
        // Predicated region
        $region49: #{tpu_custom_call.1} parent=39 // pred_check
          %p1034 = pneg %p171
        $region50: #{tpu_custom_call.1} parent=39 // pred_check_branch
          %1036 = sbr.rel (%p1034) target = $region52
        $region51: #{tpu_custom_call.1} parent=39 // pred_region
          %s1038 = ssub.s32 256, 256
          %1039 = vsyncadd %s1030, %s1038
          %s1040 = smul.addr %s23, 2
          %s1041 = smul.addr %s1040, 128
          %s1042 = scalar_lea.hbm %s5, %s1041
          %s1044 = sshll.u32 %s1033, 4
          %s1045 = int_to_ptr.vmem [resolvable:$true] %s1044
          %1047 = dma.vmem_to_hbm [thread:$0]  %s1045, 256, %s1042, %s1030
        $region52: #{tpu_custom_call.1} parent=39 // pred_fallthru
          _
      $region40: #{tpu_custom_call.1} parent=5 // pred_fallthru
        _
      %p1048 = scmp.le.s32.totalorder 2, %s14
      // Predicated region
      $region53: #{tpu_custom_call.1} parent=5 // pred_check
        %p1049 = pneg %p1048
      $region54: #{tpu_custom_call.1} parent=5 // pred_check_branch
        %1051 = sbr.rel (%p1049) target = $region56
      $region55: #{tpu_custom_call.1} parent=5 // pred_region
        %s1052 = ssub.s32 %s14, 2
        // Predicated region
        $region57: #{tpu_custom_call.1} parent=55 // pred_check
          %p1053 = pneg %p177
        $region58: #{tpu_custom_call.1} parent=55 // pred_check_branch
          %1055 = sbr.rel (%p1053) target = $region60
        $region59: #{tpu_custom_call.1} parent=55 // pred_region
          %s1056 = sand.u32 %s162, 1
          %s1057 = scalar_lea.sflag [#allocation4], %s1056
          %s1058 = sand.u32 %s162, 1
          %s1059 = smul.addr %s1058, 16
          %s1060 = scalar_lea.vmem [#allocation3], %s1059
          %1061 = dma.done %s1057, 256
        $region60: #{tpu_custom_call.1} parent=55 // pred_fallthru
          _
      $region56: #{tpu_custom_call.1} parent=5 // pred_fallthru
        _
    $region6: #{tpu_custom_call.1} parent=1 // loop_footer
      %s18 = sadd.s32 1, %s14
    $region7: #{tpu_custom_call.1} parent=1 // loop_footer_branch
      %13 = sbr.rel target = $region3
    $region8: #{tpu_custom_call.1} parent=1 // loop_exit
      _
    %1062 = vsyncpa [#allocation4], 1
    %s1063 = scalar_lea.sflag [#allocation4], 1
    %1064 = vsyncpa %s1063, 1

</llo_original>
